<compile_context>
chip_gen: v5e
topology: v5e:2x2
jax: 0.10.0
libtpu: 0.0.40
codegen_flags: <defaults>
</compile_context>

<pallas_src>
import functools

import jax
import jax.numpy as jnp
from jax.experimental import pallas as pl
from jax.experimental.pallas import tpu as pltpu


def _cdiv(a, b):
    return (a + b - 1) // b


def _round_up(x, m):
    return ((x + m - 1) // m) * m


def _label_embed_kernel(idx_ref, drop_ref, table_ref, out_ref, *, num_classes):
    # idx_ref:   (TILE_B, 1) int32   -- raw label indices
    # drop_ref:  (TILE_B, 1) int32   -- 1 => replace label with num_classes (CFG drop)
    # table_ref: (D, H)      float32 -- full embedding table (resident, single-buffered)
    # out_ref:   (TILE_B, H) float32 -- gathered embedding rows
    idx = idx_ref[...]                                      # (TILE_B, 1)
    drop = drop_ref[...]                                    # (TILE_B, 1)
    idx = jnp.where(drop != 0, num_classes, idx)            # fused token_drop

    tile_b = idx.shape[0]
    d = table_ref.shape[0]
    # one-hot(idx) @ table == table[idx]; MXU matmul, output lanes = H.
    # NOTE: an out-of-range label (e.g. force_drop while dropout_prob == 0 so
    # there is no CFG row) matches nothing -> zero row (PyTorch would raise).
    iota = jax.lax.broadcasted_iota(jnp.int32, (tile_b, d), 1)
    onehot = (iota == idx).astype(table_ref.dtype)          # (TILE_B, D)
    out_ref[...] = jnp.dot(
        onehot,
        table_ref[...],
        preferred_element_type=jnp.float32,
        precision=jax.lax.Precision.HIGHEST,                # exact f32 gather
    ).astype(out_ref.dtype)


def _label_embed_pallas(table, labels, drop, num_classes, max_tile_b=256):
    """table: (D, H) f32, labels/drop: (B,) int32 -> (B, H) f32."""
    d, h = table.shape
    b = labels.shape[0]

    # --- batch tile selection ------------------------------------------------
    # Aim for tiles <= max_tile_b, 8-aligned, with minimal padded-row waste.
    # For B >= 16 force at least 2 grid steps so both v7x TensorCores get work.
    n_tiles = max(1, _cdiv(b, max_tile_b))
    if n_tiles == 1 and b >= 16:
        n_tiles = 2
    tile_b = max(8, _round_up(_cdiv(b, n_tiles), 8))
    b_pad = n_tiles * tile_b

    idx = labels.astype(jnp.int32).reshape(b, 1)
    drp = drop.astype(jnp.int32).reshape(b, 1)
    if b_pad != b:
        idx = jnp.pad(idx, ((0, b_pad - b), (0, 0)))        # pad rows gather row 0
        drp = jnp.pad(drp, ((0, b_pad - b), (0, 0)))

    # --- scoped-VMEM budget (v5e's 16 MiB default is tight at DiT-scale H) ---
    itemsize = jnp.dtype(table.dtype).itemsize
    need = (d * h * itemsize                 # table, single-buffered
            + 2 * tile_b * h * itemsize      # output, double-buffered
            + tile_b * d * 4                 # one-hot intermediate
            + 4 * tile_b * 2 * 4)            # idx + drop tiles
    vmem_limit = int(min(max(2 * need + (1 << 20), 16 << 20), 60 << 20))

    kernel = functools.partial(_label_embed_kernel, num_classes=num_classes)

    out = pl.pallas_call(
        kernel,
        out_shape=jax.ShapeDtypeStruct((b_pad, h), table.dtype),
        grid_spec=pltpu.PrefetchScalarGridSpec(
            num_scalar_prefetch=0,
            grid=(n_tiles,),
            in_specs=[
                pl.BlockSpec((tile_b, 1), lambda i: (i, 0)),       # label tile
                pl.BlockSpec((tile_b, 1), lambda i: (i, 0)),       # drop-mask tile
                pl.BlockSpec((d, h), lambda i: (0, 0),             # full table,
                             pipeline_mode=pl.Buffered(1)),        # single-buffered
            ],
            out_specs=pl.BlockSpec((tile_b, h), lambda i: (i, 0)),
        ),
        compiler_params=pltpu.CompilerParams(
            dimension_semantics=("parallel",),   # v7x: split batch across 2 TCs
            vmem_limit_bytes=vmem_limit,
        ),
    )(idx, drp, table)
    return out[:b]


def label_embedder_forward(table, labels, num_classes, dropout_prob, train,
                           force_drop_ids=None, rng_key=None):
    """Replicates LabelEmbedder.forward(labels, train, force_drop_ids)."""
    use_dropout = dropout_prob > 0
    apply_drop = (train and use_dropout) or (force_drop_ids is not None)
    b = labels.shape[0]

    if apply_drop:
        if force_drop_ids is None:
            if rng_key is None:
                raise ValueError(
                    "rng_key is required when train=True and dropout_prob > 0")
            drop = jax.random.uniform(rng_key, (b,)) < dropout_prob
        else:
            drop = force_drop_ids == 1
        drop = drop.astype(jnp.int32)
    else:
        drop = jnp.zeros((b,), jnp.int32)

    return _label_embed_pallas(table, labels, drop, num_classes)


if __name__ == "__main__":
    num_classes = 16
    hidden_size = 128
    dropout_prob = 0.1
    batch = 8

    key = jax.random.PRNGKey(0)
    k_table, k_labels, k_labels2 = jax.random.split(key, 3)

    # nn.Embedding(num_classes + 1, hidden_size) weights (dropout_prob > 0 -> +1 CFG row)
    table = jax.random.normal(
        k_table, (num_classes + 1, hidden_size), jnp.float32) * 0.02
    labels = jax.random.randint(k_labels, (batch,), 0, num_classes, jnp.int32)
    force_drop_ids = jnp.array([1, 0, 0, 1, 0, 0, 0, 1], jnp.int32)

    # Path 1: training with explicit force_drop_ids (deterministic CFG drop).
    out_train = label_embedder_forward(
        table, labels, num_classes, dropout_prob,
        train=True, force_drop_ids=force_drop_ids)
    out_train = jax.block_until_ready(out_train)
    dropped = jnp.where(force_drop_ids == 1, num_classes, labels)
    ref_train = table[dropped]
    assert out_train.shape == (batch, hidden_size)
    assert jnp.allclose(out_train, ref_train, atol=1e-6), "train-path mismatch"

    # Path 2: eval (no dropout) -> plain embedding lookup.
    out_eval = label_embedder_forward(
        table, labels, num_classes, dropout_prob, train=False)
    out_eval = jax.block_until_ready(out_eval)
    assert jnp.allclose(out_eval, table[labels], atol=1e-6), "eval-path mismatch"

    # Path 3: ragged batch (B=20) -> 2 grid steps + padded final tile.
    labels20 = jax.random.randint(k_labels2, (20,), 0, num_classes, jnp.int32)
    out20 = label_embedder_forward(
        table, labels20, num_classes, dropout_prob, train=False)
    out20 = jax.block_until_ready(out20)
    assert out20.shape == (20, hidden_size)
    assert jnp.allclose(out20, table[labels20], atol=1e-6), "ragged-batch mismatch"

    # Path 4: training with RNG dropout -> each row is either its label row
    # or the CFG row (index num_classes).
    out_rng = label_embedder_forward(
        table, labels, num_classes, dropout_prob,
        train=True, rng_key=jax.random.PRNGKey(42))
    out_rng = jax.block_until_ready(out_rng)
    is_label = jnp.all(jnp.isclose(out_rng, table[labels], atol=1e-6), axis=-1)
    is_cfg = jnp.all(jnp.isclose(
        out_rng, jnp.broadcast_to(table[num_classes], out_rng.shape),
        atol=1e-6), axis=-1)
    assert bool(jnp.all(is_label | is_cfg)), "rng-dropout-path mismatch"

    print("KERNEL_OK")
</pallas_src>

<mosaic_0001>
module attributes {stable_mosaic.version = 11 : i64} {
  func.func @_label_embed_kernel(%arg0: i32, %arg1: memref<8x1xi32, #tpu.memory_space<vmem>>, %arg2: memref<8x1xi32, #tpu.memory_space<vmem>>, %arg3: memref<17x128xf32, #tpu.memory_space<vmem>>, %arg4: memref<8x128xf32, #tpu.memory_space<vmem>>) attributes {dimension_semantics = [#tpu.dimension_semantics<parallel>], iteration_bounds = array<i64: 1>, scalar_prefetch = 0 : i64, scratch_operands = 0 : i64, tpu.core_type = #tpu.core_type<tc>, window_params = [{transform_indices = @transform_0, window_bounds = array<i64: 8, 1>}, {transform_indices = @transform_1, window_bounds = array<i64: 8, 1>}, {pipeline_mode = #tpu.pipeline_mode<synchronous>, transform_indices = @transform_2, window_bounds = array<i64: 17, 128>}, {transform_indices = @transform_3, window_bounds = array<i64: 8, 128>}]} {
    %c0 = arith.constant 0 : index
    %c0_0 = arith.constant 0 : index
    %0 = vector.load %arg1[%c0, %c0_0] : memref<8x1xi32, #tpu.memory_space<vmem>>, vector<8x1xi32>
    %c0_1 = arith.constant 0 : index
    %c0_2 = arith.constant 0 : index
    %1 = vector.load %arg2[%c0_1, %c0_2] : memref<8x1xi32, #tpu.memory_space<vmem>>, vector<8x1xi32>
    %c0_i32 = arith.constant 0 : i32
    %2 = vector.broadcast %c0_i32 : i32 to vector<8x1xi32>
    %3 = arith.cmpi ne, %1, %2 : vector<8x1xi32>
    %c16_i32 = arith.constant 16 : i32
    %4 = vector.broadcast %c16_i32 : i32 to vector<8x1xi32>
    %5 = arith.select %3, %4, %0 : vector<8x1xi1>, vector<8x1xi32>
    %6 = tpu.iota {dimensions = array<i32: 1>} : vector<8x17xi32>
    %7 = vector.broadcast %5 : vector<8x1xi32> to vector<8x17xi32>
    %8 = arith.cmpi eq, %6, %7 : vector<8x17xi32>
    %9 = arith.extui %8 : vector<8x17xi1> to vector<8x17xi32>
    %10 = arith.sitofp %9 : vector<8x17xi32> to vector<8x17xf32>
    %c0_3 = arith.constant 0 : index
    %c0_4 = arith.constant 0 : index
    %11 = vector.load %arg3[%c0_3, %c0_4] : memref<17x128xf32, #tpu.memory_space<vmem>>, vector<17x128xf32>
    %cst = arith.constant dense<0.000000e+00> : vector<8x128xf32>
    %12 = tpu.matmul %10, %11, %cst {dimension_numbers = #tpu.dot_dimension_numbers<[1], [0], [0], [1], [0, 0, 1, 1], [], []>, precision = #tpu.contract_precision<fp32>} : vector<8x17xf32>, vector<17x128xf32>, vector<8x128xf32> -> vector<8x128xf32>
    %c0_5 = arith.constant 0 : index
    %c0_6 = arith.constant 0 : index
    %13 = vector.load %arg4[%c0_5, %c0_6] : memref<8x128xf32, #tpu.memory_space<vmem>>, vector<8x128xf32>
    tpu.vector_store %arg4[%c0_5, %c0_6], %12 {strides = array<i32>} : memref<8x128xf32, #tpu.memory_space<vmem>>, vector<8x128xf32>,
    return
  }
  func.func @transform_0(%arg0: i32) -> (i32, i32) {
    %c0_i32 = arith.constant 0 : i32
    %c0_i32_0 = arith.constant 0 : i32
    return %arg0, %c0_i32 : i32, i32
  }
  func.func @transform_1(%arg0: i32) -> (i32, i32) {
    %c0_i32 = arith.constant 0 : i32
    %c0_i32_0 = arith.constant 0 : i32
    return %arg0, %c0_i32 : i32, i32
  }
  func.func @transform_2(%arg0: i32) -> (i32, i32) {
    %c0_i32 = arith.constant 0 : i32
    %c0_i32_0 = arith.constant 0 : i32
    %c0_i32_1 = arith.constant 0 : i32
    return %c0_i32, %c0_i32_0 : i32, i32
  }
  func.func @transform_3(%arg0: i32) -> (i32, i32) {
    %c0_i32 = arith.constant 0 : i32
    %c0_i32_0 = arith.constant 0 : i32
    return %arg0, %c0_i32 : i32, i32
  }
}

</mosaic_0001>

<llo_original>
// kernel: tpu_custom_call.1
$region0: #{tpu_custom_call.1}
  #allocation0 [shape = 'u32[]', space=smem, size = 0x4, offset = 0x4, fixed_abs, tag = 'smem constant byte address 0x4 - core index']
  #allocation1 [shape = 'u32[72,128]{1,0:T(1,128)}', space=vmem, size = 0x9000, scoped, tag = 'internal scratch']
  %s0 = inlined_call_operand.vmem [shape: s32[8,1], index: 0, kind: input, shape index: {}]
  %s1 = inlined_call_operand.vmem [shape: s32[8,1], index: 1, kind: input, shape index: {}]
  %s2 = inlined_call_operand.hbm [shape: f32[17,128], index: 2, kind: input, shape index: {}]
  %s3 = inlined_call_operand.hbm [shape: f32[8,128], index: 3, kind: output, shape index: {}]
  %s4 = sld [smem:[#allocation0]]
  $region26: #{tpu_custom_call.1} parent=0
    _
  %s6 = ssub.s32 1, %s4
  %s7 = scalar_select 0, %s6, %s4
  $region1: #{tpu_custom_call.1} parent=0
    #allocation2 [shape = 'u8[12288]{0}', space=vmem, size = 0x3000, scoped, tag = 'input window, operand 2, single buffered']
    #allocation3 [shape = 's32[1]{0}', space=sflag, size = 0x4, scoped, tag = 'scoped memory for tpu_custom_call.1']
    #allocation4 [shape = 's32[1]{0}', space=sflag, size = 0x4, scoped, tag = 'scoped memory for tpu_custom_call.1']
    #allocation5 [shape = 'u8[4096]{0}', space=vmem, size = 0x1000, scoped, tag = 'output window, operand 0, single buffered']
    %8 = vsyncpa [#allocation3], 0
    %9 = vsyncpa [#allocation4], 0
    // Predicated region
    $region2: #{tpu_custom_call.1} parent=1 // pred_check
      _
    $region3: #{tpu_custom_call.1} parent=1 // pred_check_branch
      %11 = sbr.rel (0) target = $region5
    $region4: #{tpu_custom_call.1} parent=1 // pred_region
      _
    $region5: #{tpu_custom_call.1} parent=1 // pred_fallthru
      _
    // Predicated region
    $region6: #{tpu_custom_call.1} parent=1 // pred_check
      _
    $region7: #{tpu_custom_call.1} parent=1 // pred_check_branch
      %13 = sbr.rel (0) target = $region9
    $region8: #{tpu_custom_call.1} parent=1 // pred_region
      _
    $region9: #{tpu_custom_call.1} parent=1 // pred_fallthru
      _
    // Predicated region
    $region10: #{tpu_custom_call.1} parent=1 // pred_check
      _
    $region11: #{tpu_custom_call.1} parent=1 // pred_check_branch
      %15 = sbr.rel (0) target = $region13
    $region12: #{tpu_custom_call.1} parent=1 // pred_region
      %17 = vsyncadd [#allocation3], 0
      %s18 = sshll.u32 %s2, 4
      %s19 = int_to_ptr.hbm [resolvable:$true] %s18
      %s20 = sshll.u32 [#allocation2], 4
      %s21 = int_to_ptr.vmem [resolvable:$true] %s20
      %26 = dma.hbm_to_vmem [thread:$0]  %s19, 384, %s21, [#allocation3], 128, 128, 8
    $region13: #{tpu_custom_call.1} parent=1 // pred_fallthru
      _
    // Predicated region
    $region14: #{tpu_custom_call.1} parent=1 // pred_check
      _
    $region15: #{tpu_custom_call.1} parent=1 // pred_check_branch
      %28 = sbr.rel (0) target = $region17
    $region16: #{tpu_custom_call.1} parent=1 // pred_region
      %30 = dma.done [#allocation3], 384
    $region17: #{tpu_custom_call.1} parent=1 // pred_fallthru
      _
    %v31 = vld [vmem:[%s0] sm:$0xff]
    %v32 = vld [vmem:[%s1] sm:$0xff]
    %vm33 = vcmp.ne.s32.totalorder %v32, 0
    %v34 = vsel %vm33, 16, %v31
    %v35 = vlaneseq
    %v36 = vand.u32 %v35, 127
    %37 = vset.pattern.permute.xlu0 0
    %38 = vperm.xlu0 %37, %v34
    %v39 = vpop.permute.xlu0 %38
    %vm40 = vcmp.eq.s32.totalorder %v36, %v39
    %v41 = vsel %vm40, 1, 0
    %v42 = vcvt.s32.f32 %v41
    %v43 = vld [vmem:[#allocation2] sm:$0xff]
    %v44 = vld [vmem:[#allocation2 + $0x8] sm:$0xff]
    %v45 = vld [vmem:[#allocation2 + $0x10] sm:$0x1]
    %vm46 = vcmask 138240
    %v48 = vsel %vm46, %v42, 0
    %vm50 = vcmask 1040384
    %v52 = vsel %vm50, %v45, 0
    %54 = vmatpush.msra.mxu0 0.0
    %55 = vmatpush.msra.mxu0 0.0
    %56 = vmatpush.msra.mxu0 0.0
    %57 = vmatpush.msra.mxu0 0.0
    %58 = vmatpush.msra.mxu0 0.0
    %59 = vmatpush.msra.mxu0 0.0
    %60 = vmatpush.msra.mxu0 0.0
    %61 = vmatpush.msra.mxu0 0.0
    %62 = vmatpush.msra.mxu0 0.0
    %63 = vmatpush.msra.mxu0 0.0
    %64 = vmatpush.msra.mxu0 0.0
    %65 = vmatpush.msra.mxu0 0.0
    %66 = vmatpush.msra.mxu0 0.0
    %v67 = vand.u32 %v52, 4294901760
    %68 = vmatpush.msra.mxu0 %v67
    %v69 = vand.u32 %v44, 4294901760
    %70 = vmatpush.msra.mxu0 %v69
    %v71 = vand.u32 %v43, 4294901760
    %72 = vmatpush.msra.mxu0 %v71
    %v73 = vand.u32 %v48, 4294901760
    %v74 = vsub.f32 %v48, %v73
    %v75 = vand.u32 %v74, 4294901760
    %v76 = vsub.f32 %v74, %v75
    %v77 = vand.u32 %v76, 4294901760
    %78 = vmatmul.f32.gmra.mxu0 %v77
    %v79 = vpop.f32.mrf.mxu0
    %v80 = vadd.f32 0.0, %v79
    %81 = vdwg.mxu0
    %82 = vmatpush.msra.mxu0 0.0
    %83 = vmatpush.msra.mxu0 0.0
    %84 = vmatpush.msra.mxu0 0.0
    %85 = vmatpush.msra.mxu0 0.0
    %86 = vmatpush.msra.mxu0 0.0
    %87 = vmatpush.msra.mxu0 0.0
    %88 = vmatpush.msra.mxu0 0.0
    %89 = vmatpush.msra.mxu0 0.0
    %90 = vmatpush.msra.mxu0 0.0
    %91 = vmatpush.msra.mxu0 0.0
    %92 = vmatpush.msra.mxu0 0.0
    %93 = vmatpush.msra.mxu0 0.0
    %94 = vmatpush.msra.mxu0 0.0
    %v95 = vand.u32 %v52, 4294901760
    %v96 = vsub.f32 %v52, %v95
    %v97 = vand.u32 %v96, 4294901760
    %v98 = vsub.f32 %v96, %v97
    %v99 = vand.u32 %v98, 4294901760
    %100 = vmatpush.msra.mxu0 %v99
    %v101 = vand.u32 %v44, 4294901760
    %v102 = vsub.f32 %v44, %v101
    %v103 = vand.u32 %v102, 4294901760
    %v104 = vsub.f32 %v102, %v103
    %v105 = vand.u32 %v104, 4294901760
    %106 = vmatpush.msra.mxu0 %v105
    %v107 = vand.u32 %v43, 4294901760
    %v108 = vsub.f32 %v43, %v107
    %v109 = vand.u32 %v108, 4294901760
    %v110 = vsub.f32 %v108, %v109
    %v111 = vand.u32 %v110, 4294901760
    %112 = vmatpush.msra.mxu0 %v111
    %v113 = vand.u32 %v48, 4294901760
    %114 = vmatmul.f32.gmra.mxu0 %v113
    %v115 = vpop.f32.mrf.mxu0
    %v116 = vadd.f32 %v80, %v115
    %117 = vdwg.mxu0
    %118 = vmatpush.msra.mxu0 0.0
    %119 = vmatpush.msra.mxu0 0.0
    %120 = vmatpush.msra.mxu0 0.0
    %121 = vmatpush.msra.mxu0 0.0
    %122 = vmatpush.msra.mxu0 0.0
    %123 = vmatpush.msra.mxu0 0.0
    %124 = vmatpush.msra.mxu0 0.0
    %125 = vmatpush.msra.mxu0 0.0
    %126 = vmatpush.msra.mxu0 0.0
    %127 = vmatpush.msra.mxu0 0.0
    %128 = vmatpush.msra.mxu0 0.0
    %129 = vmatpush.msra.mxu0 0.0
    %130 = vmatpush.msra.mxu0 0.0
    %v131 = vand.u32 %v52, 4294901760
    %v132 = vsub.f32 %v52, %v131
    %133 = vmatpush.msra.mxu0 %v132
    %v134 = vand.u32 %v44, 4294901760
    %v135 = vsub.f32 %v44, %v134
    %136 = vmatpush.msra.mxu0 %v135
    %v137 = vand.u32 %v43, 4294901760
    %v138 = vsub.f32 %v43, %v137
    %139 = vmatpush.msra.mxu0 %v138
    %v140 = vand.u32 %v48, 4294901760
    %v141 = vsub.f32 %v48, %v140
    %142 = vmatmul.f32.gmra.mxu0 %v141
    %v143 = vpop.f32.mrf.mxu0
    %v144 = vadd.f32 %v116, %v143
    %145 = vdwg.mxu0
    %146 = vmatpush.msra.mxu0 0.0
    %147 = vmatpush.msra.mxu0 0.0
    %148 = vmatpush.msra.mxu0 0.0
    %149 = vmatpush.msra.mxu0 0.0
    %150 = vmatpush.msra.mxu0 0.0
    %151 = vmatpush.msra.mxu0 0.0
    %152 = vmatpush.msra.mxu0 0.0
    %153 = vmatpush.msra.mxu0 0.0
    %154 = vmatpush.msra.mxu0 0.0
    %155 = vmatpush.msra.mxu0 0.0
    %156 = vmatpush.msra.mxu0 0.0
    %157 = vmatpush.msra.mxu0 0.0
    %158 = vmatpush.msra.mxu0 0.0
    %v159 = vand.u32 %v52, 4294901760
    %160 = vmatpush.msra.mxu0 %v159
    %v161 = vand.u32 %v44, 4294901760
    %162 = vmatpush.msra.mxu0 %v161
    %v163 = vand.u32 %v43, 4294901760
    %164 = vmatpush.msra.mxu0 %v163
    %v165 = vand.u32 %v48, 4294901760
    %v166 = vsub.f32 %v48, %v165
    %v167 = vand.u32 %v166, 4294901760
    %168 = vmatmul.f32.gmra.mxu0 %v167
    %v169 = vpop.f32.mrf.mxu0
    %v170 = vadd.f32 %v144, %v169
    %171 = vdwg.mxu0
    %172 = vmatpush.msra.mxu0 0.0
    %173 = vmatpush.msra.mxu0 0.0
    %174 = vmatpush.msra.mxu0 0.0
    %175 = vmatpush.msra.mxu0 0.0
    %176 = vmatpush.msra.mxu0 0.0
    %177 = vmatpush.msra.mxu0 0.0
    %178 = vmatpush.msra.mxu0 0.0
    %179 = vmatpush.msra.mxu0 0.0
    %180 = vmatpush.msra.mxu0 0.0
    %181 = vmatpush.msra.mxu0 0.0
    %182 = vmatpush.msra.mxu0 0.0
    %183 = vmatpush.msra.mxu0 0.0
    %184 = vmatpush.msra.mxu0 0.0
    %v185 = vand.u32 %v52, 4294901760
    %v186 = vsub.f32 %v52, %v185
    %v187 = vand.u32 %v186, 4294901760
    %188 = vmatpush.msra.mxu0 %v187
    %v189 = vand.u32 %v44, 4294901760
    %v190 = vsub.f32 %v44, %v189
    %v191 = vand.u32 %v190, 4294901760
    %192 = vmatpush.msra.mxu0 %v191
    %v193 = vand.u32 %v43, 4294901760
    %v194 = vsub.f32 %v43, %v193
    %v195 = vand.u32 %v194, 4294901760
    %196 = vmatpush.msra.mxu0 %v195
    %v197 = vand.u32 %v48, 4294901760
    %198 = vmatmul.f32.gmra.mxu0 %v197
    %v199 = vpop.f32.mrf.mxu0
    %v200 = vadd.f32 %v170, %v199
    %201 = vdwg.mxu0
    %202 = vmatpush.msra.mxu0 0.0
    %203 = vmatpush.msra.mxu0 0.0
    %204 = vmatpush.msra.mxu0 0.0
    %205 = vmatpush.msra.mxu0 0.0
    %206 = vmatpush.msra.mxu0 0.0
    %207 = vmatpush.msra.mxu0 0.0
    %208 = vmatpush.msra.mxu0 0.0
    %209 = vmatpush.msra.mxu0 0.0
    %210 = vmatpush.msra.mxu0 0.0
    %211 = vmatpush.msra.mxu0 0.0
    %212 = vmatpush.msra.mxu0 0.0
    %213 = vmatpush.msra.mxu0 0.0
    %214 = vmatpush.msra.mxu0 0.0
    %v215 = vand.u32 %v52, 4294901760
    %216 = vmatpush.msra.mxu0 %v215
    %v217 = vand.u32 %v44, 4294901760
    %218 = vmatpush.msra.mxu0 %v217
    %v219 = vand.u32 %v43, 4294901760
    %220 = vmatpush.msra.mxu0 %v219
    %v221 = vand.u32 %v48, 4294901760
    %222 = vmatmul.f32.gmra.mxu0 %v221
    %v223 = vpop.f32.mrf.mxu0
    %v224 = vadd.f32 %v200, %v223
    %225 = vdwg.mxu0
    %226 = vst [vmem:[#allocation5] sm:$0xff] %v224
    // Predicated region
    $region18: #{tpu_custom_call.1} parent=1 // pred_check
      _
    $region19: #{tpu_custom_call.1} parent=1 // pred_check_branch
      %228 = sbr.rel (0) target = $region21
    $region20: #{tpu_custom_call.1} parent=1 // pred_region
      %230 = vsyncadd [#allocation4], 0
      %s232 = sshll.u32 [#allocation5], 4
      %s233 = int_to_ptr.vmem [resolvable:$true] %s232
      %s234 = sshll.u32 %s3, 4
      %s235 = int_to_ptr.hbm [resolvable:$true] %s234
      %237 = dma.vmem_to_hbm [thread:$0]  %s233, 128, %s235, [#allocation4]
    $region21: #{tpu_custom_call.1} parent=1 // pred_fallthru
      _
    // Predicated region
    $region22: #{tpu_custom_call.1} parent=1 // pred_check
      _
    $region23: #{tpu_custom_call.1} parent=1 // pred_check_branch
      %239 = sbr.rel (0) target = $region25
    $region24: #{tpu_custom_call.1} parent=1 // pred_region
      %241 = dma.done [#allocation4], 128
    $region25: #{tpu_custom_call.1} parent=1 // pred_fallthru
      _
    %242 = vsyncpa [#allocation3], 1
    %243 = vsyncpa [#allocation4], 1

</llo_original>
